<compile_context>
chip_gen: v7x
topology: tpu7x:2x2x1
jax: 0.10.0
libtpu: 0.0.40
codegen_flags: <defaults>
</compile_context>

<pallas_src>
import jax
import jax.numpy as jnp
from jax.experimental import pallas as pl
from jax.experimental.pallas import tpu as pltpu


_MAX_SINGLE_K = 2048            # largest feature dim handled as one K block
_BLOCK_CAP_BYTES = 8 << 20      # ~8 MiB activation block
_VMEM_LIMIT_BYTES = 48 << 20    # fits every generation's physical VMEM


def _round_up(n, m):
    return ((n + m - 1) // m) * m


def _cdiv(a, b):
    return (a + b - 1) // b


# ---------------------------------------------------------------------------
# Kernels
# ---------------------------------------------------------------------------

def _critic_kernel_single_k(x_ref, w_ref, b_ref, o_ref):
    """Fast path: whole feature dim in one block.  grid = (nB,)."""
    x = x_ref[...].astype(jnp.float32)
    w = w_ref[...].astype(jnp.float32)            # (1, D) broadcasts over rows
    o_ref[...] = (jnp.sum(x * w, axis=-1, keepdims=True)
                  + b_ref[0, 0]).astype(o_ref.dtype)


def _make_multi_k_kernel(D, TK):
    """Reduction path for D > _MAX_SINGLE_K.  grid = (nB, nK), K last."""
    n_sub = TK // 128             # TK is always a multiple of 128 on this path
    ragged = (D % TK) != 0        # last K block has a garbage tail to mask

    def kernel(x_ref, w_ref, b_ref, o_ref, acc_ref):
        # x_ref:  (TB, TK)  activations block
        # w_ref:  (1, TK)   weight-row block
        # b_ref:  (1, 1)    SMEM scalar bias
        # o_ref:  (TB, 1)   output block (same block across K)
        # acc_ref:(TB, 128) lane-dense f32 accumulator
        k = pl.program_id(1)

        @pl.when(k == 0)
        def _():
            acc_ref[...] = jnp.zeros_like(acc_ref)

        x = x_ref[...].astype(jnp.float32)
        w = w_ref[...].astype(jnp.float32)
        prod = x * w
        if ragged:
            # Mask columns past the true feature dim (only matters on the last
            # K block).  D, TK are static; k is dynamic.
            rem = D - k * TK
            col = jax.lax.broadcasted_iota(jnp.int32, prod.shape, 1)
            prod = jnp.where(col < rem, prod, 0.0)

        # Lane-dense partial reduction: (TB, TK) -> (TB, 128) with VALU adds
        # only; static 128-wide slices, no cross-lane traffic per step.
        partial = prod[:, 0:128]
        for s in range(1, n_sub):
            partial = partial + prod[:, s * 128:(s + 1) * 128]
        acc_ref[...] += partial

        @pl.when(k == pl.num_programs(1) - 1)
        def _():
            # One cross-lane (XLU) reduce + one masked (TB,1) store per tile.
            o_ref[...] = (jnp.sum(acc_ref[...], axis=-1, keepdims=True)
                          + b_ref[0, 0]).astype(o_ref.dtype)

    return kernel


# ---------------------------------------------------------------------------
# Tiling
# ---------------------------------------------------------------------------

def _choose_tiles(B, D, itemsize):
    # K tile: single full-dim block when modest (legal because a block dim equal
    # to the full array dim bypasses the 128-lane divisibility rule); otherwise
    # 2048-wide lane-aligned blocks with an in-kernel tail mask.
    TK = D if D <= _MAX_SINGLE_K else _MAX_SINGLE_K

    # Batch tile: multiple of 8 (f32 sublane), activation block capped at
    # ~8 MiB so the double-buffered pipeline stays well under the raised
    # vmem_limit_bytes on every generation.
    max_rows = max(8, _BLOCK_CAP_BYTES // (TK * itemsize))
    TB = min(1024, max_rows)
    TB = max(8, (TB // 8) * 8)
    TB = min(TB, _round_up(B, 8))

    # v7x megacore: make sure the "parallel" batch axis has >= 2 tiles whenever
    # the batch is big enough to split, so both TensorCores get work.
    if B > 8 and _cdiv(B, TB) < 2:
        TB = max(8, _round_up(_cdiv(B, 2), 8))
    return TB, TK


# ---------------------------------------------------------------------------
# Wrapper
# ---------------------------------------------------------------------------

def critic_forward(x, weight, bias):
    """Pallas equivalent of Critic.forward: x @ weight.T + bias.

    x:      (..., D) activations (f32 or bf16 — accumulation is always f32)
    weight: (1, D)   PyTorch nn.Linear(input_dim, 1) weight layout
    bias:   (1,)
    Returns (..., 1) float32.
    """
    lead = x.shape[:-1]
    D = x.shape[-1]
    x2 = x.reshape(-1, D)
    B = x2.shape[0]

    itemsize = jnp.dtype(x2.dtype).itemsize
    TB, TK = _choose_tiles(B, D, itemsize)
    nB = _cdiv(B, TB)
    nK = _cdiv(D, TK)

    b2d = jnp.asarray(bias, jnp.float32).reshape(1, 1)

    cost = pl.CostEstimate(
        flops=2 * B * D,
        transcendentals=0,
        bytes_accessed=(B * D * itemsize                       # activations, read once
                        + nB * D * jnp.dtype(weight.dtype).itemsize  # weight re-read / batch tile
                        + B * 4),                              # f32 output
    )

    if nK == 1:
        out = pl.pallas_call(
            _critic_kernel_single_k,
            out_shape=jax.ShapeDtypeStruct((B, 1), jnp.float32),
            grid=(nB,),
            in_specs=[
                pl.BlockSpec((TB, TK), lambda i: (i, 0)),             # activations
                pl.BlockSpec((1, TK), lambda i: (0, 0)),              # weight row
                pl.BlockSpec(memory_space=pltpu.MemorySpace.SMEM),    # scalar bias
            ],
            out_specs=pl.BlockSpec((TB, 1), lambda i: (i, 0)),
            compiler_params=pltpu.CompilerParams(
                dimension_semantics=("parallel",),
                vmem_limit_bytes=_VMEM_LIMIT_BYTES,
            ),
            cost_estimate=cost,
        )(x2, weight, b2d)
    else:
        out = pl.pallas_call(
            _make_multi_k_kernel(D, TK),
            out_shape=jax.ShapeDtypeStruct((B, 1), jnp.float32),
            grid=(nB, nK),                                            # K (reduction) last
            in_specs=[
                pl.BlockSpec((TB, TK), lambda i, k: (i, k)),          # activations
                pl.BlockSpec((1, TK), lambda i, k: (0, k)),           # weight row
                pl.BlockSpec(memory_space=pltpu.MemorySpace.SMEM),    # scalar bias
            ],
            out_specs=pl.BlockSpec((TB, 1), lambda i, k: (i, 0)),
            scratch_shapes=[pltpu.VMEM((TB, 128), jnp.float32)],      # lane-dense acc
            compiler_params=pltpu.CompilerParams(
                dimension_semantics=("parallel", "arbitrary"),
                vmem_limit_bytes=_VMEM_LIMIT_BYTES,
            ),
            cost_estimate=cost,
        )(x2, weight, b2d)

    return out.reshape(lead + (1,))


# ---------------------------------------------------------------------------
# Demo / self-check
# ---------------------------------------------------------------------------

if __name__ == "__main__":
    key = jax.random.PRNGKey(0)
    kx, kw, kb, kx2, kw2, kb2 = jax.random.split(key, 6)

    # --- main small-shape demo: batch=8, input_dim=32 (single-K fast path) ---
    B, D = 8, 32
    bound = 1.0 / jnp.sqrt(jnp.float32(D))          # nn.Linear default init range
    weight = jax.random.uniform(kw, (1, D), jnp.float32, -bound, bound)
    bias = jax.random.uniform(kb, (1,), jnp.float32, -bound, bound)
    x = jax.random.normal(kx, (B, D), jnp.float32)

    out = jax.block_until_ready(critic_forward(x, weight, bias))
    ref = x @ weight.T + bias
    assert out.shape == (B, 1)
    assert jnp.allclose(out, ref, atol=1e-5, rtol=1e-5)

    # --- exercise the multi-K reduction path (D > 2048, ragged tail, 2 batch
    #     tiles) with still-small arrays ---
    B2, D2 = 16, 2176
    bound2 = 1.0 / jnp.sqrt(jnp.float32(D2))
    weight2 = jax.random.uniform(kw2, (1, D2), jnp.float32, -bound2, bound2)
    bias2 = jax.random.uniform(kb2, (1,), jnp.float32, -bound2, bound2)
    x2 = jax.random.normal(kx2, (B2, D2), jnp.float32)

    out2 = jax.block_until_ready(critic_forward(x2, weight2, bias2))
    ref2 = x2 @ weight2.T + bias2
    assert out2.shape == (B2, 1)
    assert jnp.allclose(out2, ref2, atol=1e-4, rtol=1e-4)

    print("KERNEL_OK")
</pallas_src>

<mosaic_0001>
module attributes {stable_mosaic.version = 11 : i64} {
  func.func @_critic_kernel_single_k(%arg0: i32, %arg1: memref<8x32xf32, #tpu.memory_space<vmem>>, %arg2: memref<1x32xf32, #tpu.memory_space<vmem>>, %arg3: memref<1x1xf32, #tpu.memory_space<smem>>, %arg4: memref<8x1xf32, #tpu.memory_space<vmem>>) attributes {dimension_semantics = [#tpu.dimension_semantics<parallel>], iteration_bounds = array<i64: 1>, scalar_prefetch = 0 : i64, scratch_operands = 0 : i64, tpu.core_type = #tpu.core_type<tc>, window_params = [{transform_indices = @transform_0, window_bounds = array<i64: 8, 32>}, {pipeline_mode = #tpu.pipeline_mode<synchronous>, transform_indices = @transform_1, window_bounds = array<i64: 1, 32>}, {transform_indices = @transform_2, window_bounds = array<i64: 1, 1>}, {transform_indices = @transform_3, window_bounds = array<i64: 8, 1>}]} {
    %c0 = arith.constant 0 : index
    %c0_0 = arith.constant 0 : index
    %0 = vector.load %arg1[%c0, %c0_0] : memref<8x32xf32, #tpu.memory_space<vmem>>, vector<8x32xf32>
    %c0_1 = arith.constant 0 : index
    %c0_2 = arith.constant 0 : index
    %1 = vector.load %arg2[%c0_1, %c0_2] : memref<1x32xf32, #tpu.memory_space<vmem>>, vector<1x32xf32>
    %2 = vector.broadcast %1 : vector<1x32xf32> to vector<8x32xf32>
    %3 = arith.mulf %0, %2 : vector<8x32xf32>
    %cst = arith.constant dense<0.000000e+00> : vector<8xf32>
    %4 = vector.multi_reduction <add>, %3, %cst [1] : vector<8x32xf32> to vector<8xf32>
    %5 = vector.shape_cast %4 : vector<8xf32> to vector<8x1xf32>
    %c0_3 = arith.constant 0 : index
    %c0_4 = arith.constant 0 : index
    %6 = memref.load %arg3[%c0_3, %c0_4] : memref<1x1xf32, #tpu.memory_space<smem>>
    %7 = vector.broadcast %6 : f32 to vector<8x1xf32>
    %8 = arith.addf %5, %7 : vector<8x1xf32>
    %c0_5 = arith.constant 0 : index
    %c0_6 = arith.constant 0 : index
    %9 = vector.load %arg4[%c0_5, %c0_6] : memref<8x1xf32, #tpu.memory_space<vmem>>, vector<8x1xf32>
    tpu.vector_store %arg4[%c0_5, %c0_6], %8 {strides = array<i32>} : memref<8x1xf32, #tpu.memory_space<vmem>>, vector<8x1xf32>,
    return
  }
  func.func @transform_0(%arg0: i32) -> (i32, i32) {
    %c0_i32 = arith.constant 0 : i32
    %c0_i32_0 = arith.constant 0 : i32
    return %arg0, %c0_i32 : i32, i32
  }
  func.func @transform_1(%arg0: i32) -> (i32, i32) {
    %c0_i32 = arith.constant 0 : i32
    %c0_i32_0 = arith.constant 0 : i32
    %c0_i32_1 = arith.constant 0 : i32
    return %c0_i32, %c0_i32_0 : i32, i32
  }
  func.func @transform_2(%arg0: i32) -> (i32, i32) {
    %c0_i32 = arith.constant 0 : i32
    %c0_i32_0 = arith.constant 0 : i32
    %c0_i32_1 = arith.constant 0 : i32
    return %c0_i32, %c0_i32_0 : i32, i32
  }
  func.func @transform_3(%arg0: i32) -> (i32, i32) {
    %c0_i32 = arith.constant 0 : i32
    %c0_i32_0 = arith.constant 0 : i32
    return %arg0, %c0_i32 : i32, i32
  }
}

</mosaic_0001>

<llo_original>
// kernel: tpu_custom_call.1
$region0: #{tpu_custom_call.1}
  #allocation0 [shape = 'u32[]', space=smem, size = 0x4, offset = 0x4, fixed_abs, tag = 'smem constant byte address 0x4 - core index']
  #allocation1 [shape = 'u32[144,128]{1,0:T(1,128)}', space=vmem, size = 0x12000, scoped, tag = 'internal scratch']
  #allocation2 [shape = 'f32[1,1]{1,0:T(1,128)S(6)}', space=smem, size = 0x200, scoped, tag = 'scoped memory for tpu_custom_call.1']
  %s0 = inlined_call_operand.hbm [shape: f32[8,32], index: 0, kind: input, shape index: {}]
  %s1 = inlined_call_operand.vmem [shape: f32[1,32], index: 1, kind: input, shape index: {}]
  %s2 = inlined_call_operand.<no memory space> [shape: f32[1,1], index: 2, kind: input, shape index: {}]
  %s3 = inlined_call_operand.vmem [shape: f32[8,1], index: 3, kind: output, shape index: {}]
  %s4 = sld [smem:[#allocation0]]
  $region26: #{tpu_custom_call.1} parent=0
    _
  %s6 = ssub.s32 1, %s4
  %s7 = scalar_select 0, %s6, %s4
  %8 = sst [smem:[#allocation2]] %s2
  $region1: #{tpu_custom_call.1} parent=0
    #allocation3 [shape = 'u8[4096]{0}', space=vmem, size = 0x1000, scoped, tag = 'input window, operand 0, single buffered']
    #allocation4 [shape = 's32[1]{0}', space=sflag, size = 0x4, scoped, tag = 'scoped memory for tpu_custom_call.1']
    %9 = vsyncpa [#allocation4], 0
    // Predicated region
    $region2: #{tpu_custom_call.1} parent=1 // pred_check
      _
    $region3: #{tpu_custom_call.1} parent=1 // pred_check_branch
      %11 = sbr.rel (0) target = $region5
    $region4: #{tpu_custom_call.1} parent=1 // pred_region
      %s13 = ssub.s32 128, 128
      %14 = vsyncadd [#allocation4], %s13
      %s16 = sshll.u32 [#allocation3], 4
      %s17 = int_to_ptr.vmem [resolvable:$true] %s16
      %19 = dma.hbm_to_vmem [thread:$0]  %s0, 128, %s17, [#allocation4]
    $region5: #{tpu_custom_call.1} parent=1 // pred_fallthru
      _
    // Predicated region
    $region6: #{tpu_custom_call.1} parent=1 // pred_check
      _
    $region7: #{tpu_custom_call.1} parent=1 // pred_check_branch
      %21 = sbr.rel (0) target = $region9
    $region8: #{tpu_custom_call.1} parent=1 // pred_region
      _
    $region9: #{tpu_custom_call.1} parent=1 // pred_fallthru
      _
    // Predicated region
    $region10: #{tpu_custom_call.1} parent=1 // pred_check
      _
    $region11: #{tpu_custom_call.1} parent=1 // pred_check_branch
      %23 = sbr.rel (0) target = $region13
    $region12: #{tpu_custom_call.1} parent=1 // pred_region
      _
    $region13: #{tpu_custom_call.1} parent=1 // pred_fallthru
      _
    // Predicated region
    $region14: #{tpu_custom_call.1} parent=1 // pred_check
      _
    $region15: #{tpu_custom_call.1} parent=1 // pred_check_branch
      %25 = sbr.rel (0) target = $region17
    $region16: #{tpu_custom_call.1} parent=1 // pred_region
      %26 = dma.done [#allocation4], 128
    $region17: #{tpu_custom_call.1} parent=1 // pred_fallthru
      _
    %v27 = vld [vmem:[#allocation3] sm:$0xff]
    %v28 = vld [vmem:[%s1] sm:$0x1]
    %v30 = vlaneseq
    %v31 = vshrl.u32 %v30, 7
    %v32 = vsub.s32 0, %v31
    %v33 = vrot.slane %v28, %v32
    %v35 = vmul.f32 %v27, %v33
    %vm36 = vcmask 261120
    %v37 = vsel %vm36, %v35, 0.0
    %38 = vadd.xlane.f32.xlu0 %v37
    %v39 = vpop.xlane.xlu0 %38
    %s40 = sld [smem:[#allocation2]]
    %v41 = vstv %s40
    %v42 = vadd.f32 %v39, %v41
    %vm43 = vcmask 7168
    %44 = vst.msk [vmem:[%s3] sm:$0xff] %vm43, %v42
    // Predicated region
    $region18: #{tpu_custom_call.1} parent=1 // pred_check
      _
    $region19: #{tpu_custom_call.1} parent=1 // pred_check_branch
      %46 = sbr.rel (0) target = $region21
    $region20: #{tpu_custom_call.1} parent=1 // pred_region
      _
    $region21: #{tpu_custom_call.1} parent=1 // pred_fallthru
      _
    // Predicated region
    $region22: #{tpu_custom_call.1} parent=1 // pred_check
      _
    $region23: #{tpu_custom_call.1} parent=1 // pred_check_branch
      %48 = sbr.rel (0) target = $region25
    $region24: #{tpu_custom_call.1} parent=1 // pred_region
      _
    $region25: #{tpu_custom_call.1} parent=1 // pred_fallthru
      _
    %49 = vsyncpa [#allocation4], 1

</llo_original>
